<compile_context>
chip_gen: v5e
topology: v5e:2x2
jax: 0.10.0
libtpu: 0.0.40
codegen_flags: <defaults>
</compile_context>

<pallas_src>
import functools

import jax
import jax.numpy as jnp
from jax import lax
from jax.experimental import pallas as pl
from jax.experimental.pallas import tpu as pltpu


# ----------------------------- Pallas kernel -------------------------------
def _advice_kernel(patches_ref, wconv_ref, bconv_ref, wlin_ref, mask_ref,
                   sel_ref, blin_ref, o_ref):
    # Conv3d as a single MXU matmul: (5, 27) @ (27, Nsp) -> (5, Nsp), f32 acc.
    conv = jnp.dot(wconv_ref[...], patches_ref[...],
                   preferred_element_type=jnp.float32)
    conv = jnp.maximum(conv + bconv_ref[...], 0.0)            # bias + ReLU

    # Linear layer as ONE lane-contraction on the MXU (replaces the old
    # 5-iteration loop of M=1 matmuls).  wlin_ref is (5*A, Nsp); row
    # j = a*5 + c holds w_lin[a, c, :] (lane-dense, Nsp on the lane axis).
    #   P[c, a*5 + c'] = sum_n conv[c, n] * w_lin[a, c', n]
    p = lax.dot_general(conv.astype(wlin_ref.dtype), wlin_ref[...],
                        dimension_numbers=(((1,), (1,)), ((), ())),
                        preferred_element_type=jnp.float32)   # (5, 5*A)

    # Keep only the c == c' entries, fold channels (sublane reduce), then sum
    # each group of 5 lanes into its action with a tiny constant matmul.
    v = jnp.sum(p * mask_ref[...], axis=0, keepdims=True)     # (1, 5*A)
    logits = blin_ref[...] + jnp.dot(v, sel_ref[...],
                                     preferred_element_type=jnp.float32)  # (1, A)

    # Softmax over the action dimension (exp + reciprocal hit the EUP slot).
    m = jnp.max(logits, axis=1, keepdims=True)
    e = jnp.exp(logits - m)
    denom = jnp.sum(e, axis=1, keepdims=True)
    o_ref[...] = e * pl.reciprocal(denom, approx=False)


# ------------------------------ JAX wrapper ---------------------------------
def _im2col_3d(x, k=3):
    """x: (D, H, W) -> (k*k*k, (D-2)*(H-2)*(W-2)); rows ordered kd*9+kh*3+kw."""
    D, H, W = x.shape
    D2, H2, W2 = D - k + 1, H - k + 1, W - k + 1
    rows = []
    for kd in range(k):
        for kh in range(k):
            for kw in range(k):
                rows.append(x[kd:kd + D2, kh:kh + H2, kw:kw + W2].reshape(-1))
    return jnp.stack(rows, axis=0)


@functools.partial(jax.jit, static_argnames=("num_frames", "height", "width"))
def advice_model_3d_forward(x, w_conv, b_conv, w_lin, b_lin,
                            *, num_frames, height, width):
    """Pallas implementation of AdviceModel3d.forward.

    x        : any shape with num_frames*height*width elements
    w_conv   : (5, 1, 3, 3, 3)   conv3d weight (PyTorch OIDHW)
    b_conv   : (5,)              conv3d bias
    w_lin    : (A, 5*(F-2)*(H-2)*(W-2))  linear weight (PyTorch layout)
    b_lin    : (A,)              linear bias
    returns  : (1, A) softmax probabilities
    """
    A = w_lin.shape[0]
    D2, H2, W2 = num_frames - 2, height - 2, width - 2
    nsp = D2 * H2 * W2

    # --- glue: reshapes / casts only (no compute hoisted out of the kernel) ---
    x3 = x.reshape(num_frames, height, width).astype(jnp.float32)
    patches = _im2col_3d(x3).astype(jnp.bfloat16)              # (27, Nsp)
    wconv2d = w_conv.reshape(5, 27).astype(jnp.bfloat16)       # (5, 27)
    bconv2d = b_conv.reshape(5, 1).astype(jnp.float32)         # (5, 1)
    # PyTorch flatten order is channel-major: w_lin[a, c*nsp + n].  A plain
    # reshape gives row j = a*5 + c  ->  w_lin[a, c, :], lane-dense on Nsp.
    wlin_g = w_lin.reshape(A * 5, nsp).astype(jnp.bfloat16)    # (5*A, Nsp)
    blin2d = b_lin.reshape(1, A).astype(jnp.float32)           # (1, A)

    # Tiny constant selectors (constant-folded under jit):
    #   mask[c, j] = 1 iff j % 5 == c          (picks the c == c' partials)
    #   sel[j, a]  = 1 iff j // 5 == a         (sums each 5-lane group -> action)
    j = jnp.arange(5 * A)
    mask = (j[None, :] % 5 == jnp.arange(5)[:, None]).astype(jnp.float32)   # (5, 5*A)
    sel = (j[:, None] // 5 == jnp.arange(A)[None, :]).astype(jnp.float32)   # (5*A, A)

    vmem = pl.BlockSpec(memory_space=pltpu.MemorySpace.VMEM)
    return pl.pallas_call(
        _advice_kernel,
        out_shape=jax.ShapeDtypeStruct((1, A), jnp.float32),
        in_specs=[vmem] * 7,
        out_specs=vmem,
    )(patches, wconv2d, bconv2d, wlin_g, mask, sel, blin2d)


# --------------------------- pure-JAX reference ------------------------------
def _reference_forward(x, w_conv, b_conv, w_lin, b_lin, num_frames, height, width):
    xb = x.reshape(1, 1, num_frames, height, width).astype(jnp.float32)
    conv = jax.lax.conv_general_dilated(
        xb, w_conv.astype(jnp.float32),
        window_strides=(1, 1, 1), padding="VALID",
        dimension_numbers=("NCDHW", "OIDHW", "NCDHW"))
    conv = jax.nn.relu(conv + b_conv.reshape(1, 5, 1, 1, 1))
    feat = conv.reshape(1, -1)
    logits = feat @ w_lin.T + b_lin[None, :]
    return jax.nn.softmax(logits, axis=1)


# ---------------------------------- main -------------------------------------
if __name__ == "__main__":
    NUM_FRAMES, HEIGHT, WIDTH = 4, 16, 16
    NUM_ACTIONS = 8
    NSP = (NUM_FRAMES - 2) * (HEIGHT - 2) * (WIDTH - 2)        # 2*14*14 = 392

    key = jax.random.PRNGKey(0)
    k1, k2, k3, k4, k5 = jax.random.split(key, 5)
    w_conv = jax.random.uniform(k1, (5, 1, 3, 3, 3), minval=-0.05, maxval=0.05,
                                dtype=jnp.float32)
    b_conv = jax.random.uniform(k2, (5,), minval=-0.05, maxval=0.05,
                                dtype=jnp.float32)
    w_lin = jax.random.uniform(k3, (NUM_ACTIONS, 5 * NSP), minval=-0.05,
                               maxval=0.05, dtype=jnp.float32)
    b_lin = jax.random.uniform(k4, (NUM_ACTIONS,), minval=-0.05, maxval=0.05,
                               dtype=jnp.float32)
    x = jax.random.normal(k5, (NUM_FRAMES, HEIGHT, WIDTH), dtype=jnp.float32)

    out = advice_model_3d_forward(
        x, w_conv, b_conv, w_lin, b_lin,
        num_frames=NUM_FRAMES, height=HEIGHT, width=WIDTH)
    out = jax.block_until_ready(out)

    ref = _reference_forward(x, w_conv, b_conv, w_lin, b_lin,
                             NUM_FRAMES, HEIGHT, WIDTH)
    ref = jax.block_until_ready(ref)

    assert out.shape == (1, NUM_ACTIONS)
    assert jnp.allclose(jnp.sum(out), 1.0, atol=1e-4)
    assert jnp.allclose(out, ref, atol=2e-3, rtol=2e-2)

    print("KERNEL_OK")
</pallas_src>

<mosaic_0001>
module attributes {stable_mosaic.version = 11 : i64} {
  func.func @_advice_kernel(%arg0: memref<27x392xbf16, #tpu.memory_space<vmem>>, %arg1: memref<5x27xbf16, #tpu.memory_space<vmem>>, %arg2: memref<5x1xf32, #tpu.memory_space<vmem>>, %arg3: memref<40x392xbf16, #tpu.memory_space<vmem>>, %arg4: memref<5x40xf32, #tpu.memory_space<vmem>>, %arg5: memref<40x8xf32, #tpu.memory_space<vmem>>, %arg6: memref<1x8xf32, #tpu.memory_space<vmem>>, %arg7: memref<1x8xf32, #tpu.memory_space<vmem>>) attributes {dimension_semantics = [], scalar_prefetch = 0 : i64, scratch_operands = 0 : i64, tpu.core_type = #tpu.core_type<tc>} {
    %c0 = arith.constant 0 : index
    %c0_0 = arith.constant 0 : index
    %0 = vector.load %arg1[%c0, %c0_0] : memref<5x27xbf16, #tpu.memory_space<vmem>>, vector<5x27xbf16>
    %c0_1 = arith.constant 0 : index
    %c0_2 = arith.constant 0 : index
    %1 = vector.load %arg0[%c0_1, %c0_2] : memref<27x392xbf16, #tpu.memory_space<vmem>>, vector<27x392xbf16>
    %cst = arith.constant dense<0.000000e+00> : vector<5x392xf32>
    %2 = tpu.matmul %0, %1, %cst {dimension_numbers = #tpu.dot_dimension_numbers<[1], [0], [0], [1], [0, 0, 1, 1], [], []>} : vector<5x27xbf16>, vector<27x392xbf16>, vector<5x392xf32> -> vector<5x392xf32>
    %c0_3 = arith.constant 0 : index
    %c0_4 = arith.constant 0 : index
    %3 = vector.load %arg2[%c0_3, %c0_4] : memref<5x1xf32, #tpu.memory_space<vmem>>, vector<5x1xf32>
    %4 = vector.broadcast %3 : vector<5x1xf32> to vector<5x392xf32>
    %5 = arith.addf %2, %4 : vector<5x392xf32>
    %cst_5 = arith.constant 0.000000e+00 : f32
    %6 = vector.broadcast %cst_5 : f32 to vector<5x392xf32>
    %7 = arith.maximumf %5, %6 : vector<5x392xf32>
    %8 = arith.truncf %7 : vector<5x392xf32> to vector<5x392xbf16>
    %c0_6 = arith.constant 0 : index
    %c0_7 = arith.constant 0 : index
    %9 = vector.load %arg3[%c0_6, %c0_7] : memref<40x392xbf16, #tpu.memory_space<vmem>>, vector<40x392xbf16>
    %cst_8 = arith.constant dense<0.000000e+00> : vector<5x40xf32>
    %10 = tpu.matmul %8, %9, %cst_8 {dimension_numbers = #tpu.dot_dimension_numbers<[1], [1], [0], [0], [0, 0, 1, 0], [], []>} : vector<5x392xbf16>, vector<40x392xbf16>, vector<5x40xf32> -> vector<5x40xf32>
    %c0_9 = arith.constant 0 : index
    %c0_10 = arith.constant 0 : index
    %11 = vector.load %arg4[%c0_9, %c0_10] : memref<5x40xf32, #tpu.memory_space<vmem>>, vector<5x40xf32>
    %12 = arith.mulf %10, %11 : vector<5x40xf32>
    %cst_11 = arith.constant dense<0.000000e+00> : vector<40xf32>
    %13 = vector.multi_reduction <add>, %12, %cst_11 [0] : vector<5x40xf32> to vector<40xf32>
    %14 = vector.shape_cast %13 : vector<40xf32> to vector<1x40xf32>
    %c0_12 = arith.constant 0 : index
    %c0_13 = arith.constant 0 : index
    %15 = vector.load %arg6[%c0_12, %c0_13] : memref<1x8xf32, #tpu.memory_space<vmem>>, vector<1x8xf32>
    %c0_14 = arith.constant 0 : index
    %c0_15 = arith.constant 0 : index
    %16 = vector.load %arg5[%c0_14, %c0_15] : memref<40x8xf32, #tpu.memory_space<vmem>>, vector<40x8xf32>
    %cst_16 = arith.constant dense<0.000000e+00> : vector<1x8xf32>
    %17 = tpu.matmul %14, %16, %cst_16 {dimension_numbers = #tpu.dot_dimension_numbers<[1], [0], [0], [1], [0, 0, 1, 1], [], []>} : vector<1x40xf32>, vector<40x8xf32>, vector<1x8xf32> -> vector<1x8xf32>
    %18 = arith.addf %15, %17 : vector<1x8xf32>
    %cst_17 = arith.constant dense<0xFF800000> : vector<1xf32>
    %19 = vector.multi_reduction <maximumf>, %18, %cst_17 [1] : vector<1x8xf32> to vector<1xf32>
    %20 = vector.shape_cast %19 : vector<1xf32> to vector<1x1xf32>
    %21 = vector.broadcast %20 : vector<1x1xf32> to vector<1x8xf32>
    %22 = arith.subf %18, %21 : vector<1x8xf32>
    %23 = math.exp %22 : vector<1x8xf32>
    %cst_18 = arith.constant dense<0.000000e+00> : vector<1xf32>
    %24 = vector.multi_reduction <add>, %23, %cst_18 [1] : vector<1x8xf32> to vector<1xf32>
    %25 = vector.shape_cast %24 : vector<1xf32> to vector<1x1xf32>
    %26 = tpu.reciprocal %25 : vector<1x1xf32> -> vector<1x1xf32>
    %27 = vector.broadcast %26 : vector<1x1xf32> to vector<1x8xf32>
    %28 = arith.mulf %23, %27 : vector<1x8xf32>
    %c0_19 = arith.constant 0 : index
    %c0_20 = arith.constant 0 : index
    %29 = vector.load %arg7[%c0_19, %c0_20] : memref<1x8xf32, #tpu.memory_space<vmem>>, vector<1x8xf32>
    tpu.vector_store %arg7[%c0_19, %c0_20], %28 {strides = array<i32>} : memref<1x8xf32, #tpu.memory_space<vmem>>, vector<1x8xf32>,
    return
  }
}

</mosaic_0001>

<llo_original>
// kernel: advice_model_3d_forward.1
$region0: #{advice_model_3d_forward.1}
  #allocation0 [shape = 'u32[]', space=smem, size = 0x4, offset = 0x4, fixed_abs, tag = 'smem constant byte address 0x4 - core index']
  #allocation1 [shape = 'u32[72,128]{1,0:T(1,128)}', space=vmem, size = 0x9000, scoped, tag = 'internal scratch']
  %s0 = inlined_call_operand.vmem [shape: bf16[27,392], index: 0, kind: input, shape index: {}]
  %s1 = inlined_call_operand.vmem [shape: bf16[5,27], index: 1, kind: input, shape index: {}]
  %s2 = inlined_call_operand.vmem [shape: f32[5,1], index: 2, kind: input, shape index: {}]
  %s3 = inlined_call_operand.vmem [shape: bf16[40,392], index: 3, kind: input, shape index: {}]
  %s4 = inlined_call_operand.vmem [shape: f32[5,40], index: 4, kind: input, shape index: {}]
  %s5 = inlined_call_operand.vmem [shape: f32[40,8], index: 5, kind: input, shape index: {}]
  %s6 = inlined_call_operand.vmem [shape: f32[1,8], index: 6, kind: input, shape index: {}]
  %s7 = inlined_call_operand.hbm [shape: f32[1,8], index: 7, kind: output, shape index: {}]
  %s8 = sld [smem:[#allocation0]]
  $region38: #{advice_model_3d_forward.1} parent=0
    _
  %s10 = ssub.s32 1, %s8
  %s11 = scalar_select 0, %s10, %s8
  $region1: #{advice_model_3d_forward.1} parent=0
    #allocation2 [shape = 'u8[512]{0}', space=vmem, size = 0x400, scoped, tag = 'output window, operand 0, single buffered']
    #allocation3 [shape = 's32[1]{0}', space=sflag, size = 0x4, scoped, tag = 'scoped memory for advice_model_3d_forward.1']
    %12 = vsyncpa [#allocation3], 0
    // Predicated region
    $region2: #{advice_model_3d_forward.1} parent=1 // pred_check
      _
    $region3: #{advice_model_3d_forward.1} parent=1 // pred_check_branch
      %14 = sbr.rel (0) target = $region5
    $region4: #{advice_model_3d_forward.1} parent=1 // pred_region
      _
    $region5: #{advice_model_3d_forward.1} parent=1 // pred_fallthru
      _
    // Predicated region
    $region6: #{advice_model_3d_forward.1} parent=1 // pred_check
      _
    $region7: #{advice_model_3d_forward.1} parent=1 // pred_check_branch
      %16 = sbr.rel (0) target = $region9
    $region8: #{advice_model_3d_forward.1} parent=1 // pred_region
      _
    $region9: #{advice_model_3d_forward.1} parent=1 // pred_fallthru
      _
    // Predicated region
    $region10: #{advice_model_3d_forward.1} parent=1 // pred_check
      _
    $region11: #{advice_model_3d_forward.1} parent=1 // pred_check_branch
      %18 = sbr.rel (0) target = $region13
    $region12: #{advice_model_3d_forward.1} parent=1 // pred_region
      _
    $region13: #{advice_model_3d_forward.1} parent=1 // pred_fallthru
      _
    // Predicated region
    $region14: #{advice_model_3d_forward.1} parent=1 // pred_check
      _
    $region15: #{advice_model_3d_forward.1} parent=1 // pred_check_branch
      %20 = sbr.rel (0) target = $region17
    $region16: #{advice_model_3d_forward.1} parent=1 // pred_region
      _
    $region17: #{advice_model_3d_forward.1} parent=1 // pred_fallthru
      _
    // Predicated region
    $region18: #{advice_model_3d_forward.1} parent=1 // pred_check
      _
    $region19: #{advice_model_3d_forward.1} parent=1 // pred_check_branch
      %22 = sbr.rel (0) target = $region21
    $region20: #{advice_model_3d_forward.1} parent=1 // pred_region
      _
    $region21: #{advice_model_3d_forward.1} parent=1 // pred_fallthru
      _
    // Predicated region
    $region22: #{advice_model_3d_forward.1} parent=1 // pred_check
      _
    $region23: #{advice_model_3d_forward.1} parent=1 // pred_check_branch
      %24 = sbr.rel (0) target = $region25
    $region24: #{advice_model_3d_forward.1} parent=1 // pred_region
      _
    $region25: #{advice_model_3d_forward.1} parent=1 // pred_fallthru
      _
    // Predicated region
    $region26: #{advice_model_3d_forward.1} parent=1 // pred_check
      _
    $region27: #{advice_model_3d_forward.1} parent=1 // pred_check_branch
      %26 = sbr.rel (0) target = $region29
    $region28: #{advice_model_3d_forward.1} parent=1 // pred_region
      _
    $region29: #{advice_model_3d_forward.1} parent=1 // pred_fallthru
      _
    %v28 = vld [vmem:[%s1] sm:$0x7]
    %v29 = vld [vmem:[%s0] sm:$0xff]
    %v30 = vld [vmem:[%s0 + $0x8] sm:$0xff]
    %v31 = vld [vmem:[%s0 + $0x10] sm:$0xff]
    %v32 = vld [vmem:[%s0 + $0x18] sm:$0xff]
    %v33 = vld [vmem:[%s0 + $0x20] sm:$0xff]
    %v34 = vld [vmem:[%s0 + $0x28] sm:$0xff]
    %v35 = vld [vmem:[%s0 + $0x30] sm:$0x33]
    %v36 = vld [vmem:[%s0 + $0x38] sm:$0x33]
    %v37 = vld [vmem:[%s2] sm:$0x1f]
    %39 = vset.pattern.permute.xlu0 0
    %40 = vperm.xlu0 %39, %v37
    %v41 = vpop.permute.xlu0 %40
    %v51 = vunpack.c.l.b16 %v29
    %v52 = vunpack.c.h.b16 %v29
    %v53 = vunpack.c.l.b16 %v30
    %v54 = vunpack.c.h.b16 %v30
    %v55 = vunpack.c.l.b16 %v31
    %v56 = vunpack.c.h.b16 %v31
    %v57 = vunpack.c.l.b16 %v32
    %v58 = vunpack.c.h.b16 %v32
    %v59 = vunpack.c.l.b16 %v33
    %v60 = vunpack.c.h.b16 %v33
    %v61 = vunpack.c.l.b16 %v34
    %v62 = vunpack.c.h.b16 %v34
    %v63 = vunpack.c.l.b16 %v35
    %v64 = vunpack.c.h.b16 %v35
    %v65 = vunpack.c.l.b16 %v36
    %v66 = vunpack.c.h.b16 %v36
    %v67 = vpack.c.b16 %v55, %v51
    %v68 = vpack.c.b16 %v56, %v52
    %v69 = vpack.c.b16 %v57, %v53
    %v70 = vpack.c.b16 %v58, %v54
    %v71 = vpack.c.b16 %v63, %v59
    %v72 = vpack.c.b16 %v64, %v60
    %v73 = vpack.c.b16 %v65, %v61
    %v74 = vpack.c.b16 %v66, %v62
    %vm79 = vcmask 220160
    %v81 = vsel %vm79, %v28, 0
    %vm83 = vcmask 1044480
    %vm84 = vcmask 1045504
    %v85 = vsel %vm83, 4294967295, 65535
    %v86 = vsel %vm84, %v85, 0
    %v88 = vand.u32 %v71, %v86
    %v91 = vand.u32 %v72, %v86
    %v94 = vand.u32 %v73, %v86
    %v97 = vand.u32 %v74, %v86
    %99 = vmatpush.bf16.msra.mxu0 0
    %100 = vmatpush.bf16.msra.mxu0 0
    %101 = vmatpush.bf16.msra.mxu0 0
    %102 = vmatpush.bf16.msra.mxu0 0
    %103 = vmatpush.bf16.msra.mxu0 0
    %104 = vmatpush.bf16.msra.mxu0 0
    %105 = vmatpush.bf16.msra.mxu0 %v88
    %106 = vmatpush.bf16.msra.mxu0 %v67
    %107 = vmatmul.bf16.gmra.mxu0 %v81
    %v108 = vpop.f32.mrf.mxu0
    %v109 = vadd.f32 %v41, %v108
    %v110 = vpop.f32.mrf.mxu0
    %111 = vdwg.mxu0
    %112 = vmatpush.bf16.msra.mxu0 0
    %113 = vmatpush.bf16.msra.mxu0 0
    %114 = vmatpush.bf16.msra.mxu0 0
    %115 = vmatpush.bf16.msra.mxu0 0
    %116 = vmatpush.bf16.msra.mxu0 0
    %117 = vmatpush.bf16.msra.mxu0 0
    %118 = vmatpush.bf16.msra.mxu0 %v91
    %119 = vmatpush.bf16.msra.mxu0 %v68
    %120 = vmatmul.bf16.gmra.mxu0 %v81
    %v121 = vpop.f32.mrf.mxu0
    %v122 = vadd.f32 %v41, %v121
    %v123 = vpop.f32.mrf.mxu0
    %124 = vdwg.mxu0
    %125 = vmatpush.bf16.msra.mxu0 0
    %126 = vmatpush.bf16.msra.mxu0 0
    %127 = vmatpush.bf16.msra.mxu0 0
    %128 = vmatpush.bf16.msra.mxu0 0
    %129 = vmatpush.bf16.msra.mxu0 0
    %130 = vmatpush.bf16.msra.mxu0 0
    %131 = vmatpush.bf16.msra.mxu0 %v94
    %132 = vmatpush.bf16.msra.mxu0 %v69
    %133 = vmatmul.bf16.gmra.mxu0 %v81
    %v134 = vpop.f32.mrf.mxu0
    %v135 = vadd.f32 %v41, %v134
    %v136 = vpop.f32.mrf.mxu0
    %137 = vdwg.mxu0
    %138 = vmatpush.bf16.msra.mxu0 0
    %139 = vmatpush.bf16.msra.mxu0 0
    %140 = vmatpush.bf16.msra.mxu0 0
    %141 = vmatpush.bf16.msra.mxu0 0
    %142 = vmatpush.bf16.msra.mxu0 0
    %143 = vmatpush.bf16.msra.mxu0 0
    %144 = vmatpush.bf16.msra.mxu0 %v97
    %145 = vmatpush.bf16.msra.mxu0 %v70
    %146 = vmatmul.bf16.gmra.mxu0 %v81
    %v147 = vpop.f32.mrf.mxu0
    %v148 = vadd.f32 %v41, %v147
    %v149 = vpop.f32.mrf.mxu0
    %150 = vdwg.mxu0
    %v151 = vmax.f32 %v109, 0.0
    %v152 = vmax.f32 %v122, 0.0
    %v153 = vmax.f32 %v135, 0.0
    %v154 = vmax.f32 %v148, 0.0
    %v155 = vpack.c.bf16 %v151, %v151
    %v156 = vpack.c.bf16 %v152, %v152
    %v157 = vpack.c.bf16 %v153, %v153
    %v158 = vpack.c.bf16 %v154, %v154
    %v159 = vld [vmem:[%s3] sm:$0xff]
    %v160 = vld [vmem:[%s3 + $0x8] sm:$0xff]
    %v161 = vld [vmem:[%s3 + $0x10] sm:$0xff]
    %v162 = vld [vmem:[%s3 + $0x18] sm:$0xff]
    %v163 = vld [vmem:[%s3 + $0x20] sm:$0xff]
    %v164 = vld [vmem:[%s3 + $0x28] sm:$0xff]
    %v165 = vld [vmem:[%s3 + $0x30] sm:$0xff]
    %v166 = vld [vmem:[%s3 + $0x38] sm:$0xff]
    %v167 = vld [vmem:[%s3 + $0x40] sm:$0xff]
    %v168 = vld [vmem:[%s3 + $0x48] sm:$0xff]
    %v179 = vunpack.c.l.b16 %v159
    %v180 = vunpack.c.h.b16 %v159
    %v181 = vunpack.c.l.b16 %v160
    %v182 = vunpack.c.h.b16 %v160
    %v183 = vunpack.c.l.b16 %v161
    %v184 = vunpack.c.h.b16 %v161
    %v185 = vunpack.c.l.b16 %v162
    %v186 = vunpack.c.h.b16 %v162
    %v187 = vunpack.c.l.b16 %v163
    %v188 = vunpack.c.h.b16 %v163
    %v189 = vunpack.c.l.b16 %v164
    %v190 = vunpack.c.h.b16 %v164
    %v191 = vunpack.c.l.b16 %v165
    %v192 = vunpack.c.h.b16 %v165
    %v193 = vunpack.c.l.b16 %v166
    %v194 = vunpack.c.h.b16 %v166
    %v195 = vunpack.c.l.b16 %v167
    %v196 = vunpack.c.h.b16 %v167
    %v197 = vunpack.c.l.b16 %v168
    %v198 = vunpack.c.h.b16 %v168
    %v199 = vpack.c.b16 %v183, %v179
    %v200 = vpack.c.b16 %v184, %v180
    %v201 = vpack.c.b16 %v185, %v181
    %v202 = vpack.c.b16 %v186, %v182
    %v203 = vpack.c.b16 %v191, %v187
    %v204 = vpack.c.b16 %v192, %v188
    %v205 = vpack.c.b16 %v193, %v189
    %v206 = vpack.c.b16 %v194, %v190
    %v207 = vpack.c.b16 %v195, %v195
    %v208 = vpack.c.b16 %v196, %v196
    %v209 = vpack.c.b16 %v197, %v197
    %v210 = vpack.c.b16 %v198, %v198
    %vm220 = vcmask 64512
    %v222 = vsel %vm220, %v158, 0
    %v225 = vsel %vm220, %v202, 0
    %v228 = vsel %vm220, %v206, 0
    %v231 = vsel %vm220, %v210, 0
    %233 = vmatpush.bf16.xpose.msra.mxu0 0
    %234 = vmatpush.bf16.xpose.msra.mxu0 0
    %235 = vmatpush.bf16.xpose.msra.mxu0 0
    %236 = vmatpush.bf16.xpose.msra.mxu0 0
    %237 = vmatpush.bf16.xpose.msra.mxu0 0
    %238 = vmatpush.bf16.xpose.msra.mxu0 %v207
    %239 = vmatpush.bf16.xpose.msra.mxu0 %v203
    %240 = vmatpush.bf16.xpose.msra.mxu0 %v199
    %241 = vmatmul.bf16.gmra.mxu0 %v155
    %v242 = vpop.f32.mrf.mxu0
    %v243 = vadd.f32 0.0, %v242
    %v244 = vpop.f32.mrf.mxu0
    %245 = vdwg.mxu0
    %246 = vmatpush.bf16.xpose.msra.mxu0 0
    %247 = vmatpush.bf16.xpose.msra.mxu0 0
    %248 = vmatpush.bf16.xpose.msra.mxu0 0
    %249 = vmatpush.bf16.xpose.msra.mxu0 0
    %250 = vmatpush.bf16.xpose.msra.mxu0 0
    %251 = vmatpush.bf16.xpose.msra.mxu0 %v208
    %252 = vmatpush.bf16.xpose.msra.mxu0 %v204
    %253 = vmatpush.bf16.xpose.msra.mxu0 %v200
    %254 = vmatmul.bf16.gmra.mxu0 %v156
    %v255 = vpop.f32.mrf.mxu0
    %v256 = vadd.f32 %v243, %v255
    %v257 = vpop.f32.mrf.mxu0
    %258 = vdwg.mxu0
    %259 = vmatpush.bf16.xpose.msra.mxu0 0
    %260 = vmatpush.bf16.xpose.msra.mxu0 0
    %261 = vmatpush.bf16.xpose.msra.mxu0 0
    %262 = vmatpush.bf16.xpose.msra.mxu0 0
    %263 = vmatpush.bf16.xpose.msra.mxu0 0
    %264 = vmatpush.bf16.xpose.msra.mxu0 %v209
    %265 = vmatpush.bf16.xpose.msra.mxu0 %v205
    %266 = vmatpush.bf16.xpose.msra.mxu0 %v201
    %267 = vmatmul.bf16.gmra.mxu0 %v157
    %v268 = vpop.f32.mrf.mxu0
    %v269 = vadd.f32 %v256, %v268
    %v270 = vpop.f32.mrf.mxu0
    %271 = vdwg.mxu0
    %272 = vmatpush.bf16.xpose.msra.mxu0 0
    %273 = vmatpush.bf16.xpose.msra.mxu0 0
    %274 = vmatpush.bf16.xpose.msra.mxu0 0
    %275 = vmatpush.bf16.xpose.msra.mxu0 0
    %276 = vmatpush.bf16.xpose.msra.mxu0 0
    %277 = vmatpush.bf16.xpose.msra.mxu0 %v231
    %278 = vmatpush.bf16.xpose.msra.mxu0 %v228
    %279 = vmatpush.bf16.xpose.msra.mxu0 %v225
    %280 = vmatmul.bf16.gmra.mxu0 %v222
    %v281 = vpop.f32.mrf.mxu0
    %v282 = vadd.f32 %v269, %v281
    %v283 = vpop.f32.mrf.mxu0
    %284 = vdwg.mxu0
    %v285 = vld [vmem:[%s4] sm:$0x1f]
    %v286 = vmul.f32 %v282, %v285
    %vm287 = vcmask 323584
    %v288 = vsel %vm287, %v286, 0.0
    %v289 = vrot.slane %v288, 4
    %v290 = vadd.f32 %v288, %v289
    %v291 = vrot.slane %v290, 2
    %v292 = vadd.f32 %v290, %v291
    %v293 = vrot.slane %v292, 1
    %v294 = vadd.f32 %v292, %v293
    %v295 = vld [vmem:[%s6] sm:$0x1]
    %v296 = vld [vmem:[%s5] sm:$0xff]
    %v297 = vld [vmem:[%s5 + $0x8] sm:$0xff]
    %v298 = vld [vmem:[%s5 + $0x10] sm:$0xff]
    %v299 = vld [vmem:[%s5 + $0x18] sm:$0xff]
    %v300 = vld [vmem:[%s5 + $0x20] sm:$0xff]
    %vm301 = vcmask 326656
    %v303 = vsel %vm301, %v294, 0
    %305 = vmatpush.msra.mxu0 0.0
    %306 = vmatpush.msra.mxu0 0.0
    %307 = vmatpush.msra.mxu0 0.0
    %308 = vmatpush.msra.mxu0 0.0
    %309 = vmatpush.msra.mxu0 0.0
    %310 = vmatpush.msra.mxu0 0.0
    %311 = vmatpush.msra.mxu0 0.0
    %312 = vmatpush.msra.mxu0 0.0
    %313 = vmatpush.msra.mxu0 0.0
    %314 = vmatpush.msra.mxu0 0.0
    %315 = vmatpush.msra.mxu0 0.0
    %316 = vmatpush.msra.mxu0 %v300
    %317 = vmatpush.msra.mxu0 %v299
    %318 = vmatpush.msra.mxu0 %v298
    %319 = vmatpush.msra.mxu0 %v297
    %320 = vmatpush.msra.mxu0 %v296
    %321 = vmatmul.f32.gmra.mxu0 %v303
    %v322 = vpop.f32.mrf.mxu0
    %v323 = vadd.f32 0.0, %v322
    %324 = vdwg.mxu0
    %v325 = vadd.f32 %v295, %v323
    %vm326 = vcmask 57344
    %v327 = vsel %vm326, %v325, -inf
    %328 = vmax.xlane.f32.xlu0 %v327
    %v329 = vpop.xlane.xlu0 %328
    %v330 = vsub.f32 %v325, %v329
    %v331 = vmul.f32 %v330, 1.442695
    %v332 = vpow.pop %v331
    %v333 = vsel %vm326, %v332, 0.0
    %334 = vadd.xlane.f32.xlu0 %v333
    %v335 = vpop.xlane.xlu0 %334
    %v336 = vrcp.pop %v335
    %v337 = vmul.f32 %v335, %v336
    %v338 = vsub.f32 1.0, %v337
    %v339 = vmul.f32 %v336, %v338
    %v340 = vadd.f32 %v336, %v339
    %vm341 = vweird.f32 %v335
    %vm342 = vweird.f32 %v336
    %vm343 = vmor %vm341, %vm342
    %v344 = vsel %vm343, %v336, %v340
    %v345 = vand.u32 2147483647, %v335
    %vm346 = vcmp.eq.f32.partialorder %v345, 8.507059e+37
    %v347 = vand.u32 %v335, 2147483648
    %v348 = vor.u32 1.1754944e-38, %v347
    %v349 = vsel %vm346, %v348, %v344
    %v350 = vmul.f32 %v332, %v349
    %351 = vst.msk [vmem:[#allocation2] sm:$0x1] %vm326, %v350
    // Predicated region
    $region30: #{advice_model_3d_forward.1} parent=1 // pred_check
      _
    $region31: #{advice_model_3d_forward.1} parent=1 // pred_check_branch
      %353 = sbr.rel (0) target = $region33
    $region32: #{advice_model_3d_forward.1} parent=1 // pred_region
      %355 = vsyncadd [#allocation3], 0
      %s357 = sshll.u32 [#allocation2], 4
      %s358 = int_to_ptr.vmem [resolvable:$true] %s357
      %s359 = sshll.u32 %s7, 4
      %s360 = int_to_ptr.hbm [resolvable:$true] %s359
      %362 = dma.vmem_to_hbm [thread:$0]  %s358, 16, %s360, [#allocation3]
    $region33: #{advice_model_3d_forward.1} parent=1 // pred_fallthru
      _
    // Predicated region
    $region34: #{advice_model_3d_forward.1} parent=1 // pred_check
      _
    $region35: #{advice_model_3d_forward.1} parent=1 // pred_check_branch
      %364 = sbr.rel (0) target = $region37
    $region36: #{advice_model_3d_forward.1} parent=1 // pred_region
      %366 = dma.done [#allocation3], 16
    $region37: #{advice_model_3d_forward.1} parent=1 // pred_fallthru
      _
    %367 = vsyncpa [#allocation3], 1

</llo_original>
